<compile_context>
chip_gen: v5e
topology: v5e:2x2
jax: 0.10.0
libtpu: 0.0.40
codegen_flags: <defaults>
</compile_context>

<pallas_src>
import functools

import jax
import jax.numpy as jnp
from jax.experimental import pallas as pl
from jax.experimental.pallas import tpu as pltpu


def _cdiv(a, b):
    return (a + b - 1) // b


def _rup(v, m):
    return _cdiv(v, m) * m


def _rdown(v, m):
    return max(m, (v // m) * m)


def _vmem_capacity_bytes():
    """Best-effort VMEM capacity query; falls back to 128 MiB (v5e/v6e-class)."""
    try:
        cap = int(pltpu.get_tpu_info().vmem_capacity_bytes)
        if cap > 0:
            return cap
    except Exception:
        pass
    return 128 * 1024 * 1024


def _pick_group(H, W, max_lanes=1024):
    """Smallest power-of-two G with G*W a multiple of 128, G | H, G*W <= max_lanes.

    Returns 1 (no repack) when W is already lane-dense or no valid G exists.
    """
    if W >= 128 or W <= 0 or H <= 0:
        return 1
    G = 1
    while (G * W) % 128 != 0:
        G *= 2
        if G * W > max_lanes or H % G != 0:
            return 1
    return G


def _pick_tiles(BC, Hp, Wp, itemsize, budget, force_full_w):
    """Choose (TBC, TH, TW) for the (BC, Hp, Wp) input under a per-block budget."""
    # Sublane packing tile: 8 rows for 32-bit, 16 for 16-bit, 32 for 8-bit dtypes.
    sub = {4: 8, 2: 16, 1: 32}.get(itemsize, 8)
    bc_pad = _rup(BC, sub)
    hp_pad = _rup(max(Hp, 1), sub)

    # Lane (last-dim) tile: keep the full width whenever a minimal block fits the
    # budget; otherwise the largest multiple of 128 the budget allows (long,
    # contiguous HBM bursts — matters most on v5e).
    if force_full_w or Wp <= 128 or sub * sub * Wp * itemsize <= budget:
        TW = Wp
    else:
        tw = (budget // (sub * sub * itemsize)) // 128 * 128
        TW = max(128, min(tw, _rup(Wp, 128)))

    # Reduction (H) tile: full H' if it fits, else a sublane multiple.  Capped so
    # the per-slice f32 upcast stays a modest number of vregs (no spills).
    th_cap = max(sub, min(_rdown(budget // (sub * TW * itemsize), sub), 256))
    TH = Hp if hp_pad <= th_cap else th_cap

    # Batch (BC) tile: whatever budget remains.
    TBC = _rdown(budget // (_rup(TH, sub) * TW * itemsize), sub)
    TBC = min(TBC, bc_pad)

    # Megacore (v7x): guarantee at least two steps along a parallel grid axis.
    if _cdiv(BC, TBC) * _cdiv(Wp, TW) < 2 and bc_pad >= 2 * sub:
        TBC = _rup(_cdiv(bc_pad, 2), sub)

    return TBC, TH, TW


def _sum_h_kernel(x_ref, o_ref, acc_ref, *, Hp, TH, G, W, mask_last):
    """Reduce a (TBC, TH, TW) block over its H axis into a resident f32 accumulator."""
    h = pl.program_id(2)
    last = pl.num_programs(2) - 1

    @pl.when(h == 0)
    def _():
        acc_ref[...] = jnp.zeros_like(acc_ref)

    def accumulate(masked):
        x = x_ref[...].astype(jnp.float32)  # (TBC, TH, TW)
        if masked:
            h_idx = jax.lax.broadcasted_iota(jnp.int32, (1, TH, 1), 1)
            x = jnp.where(h * TH + h_idx < Hp, x, 0.0)
        acc_ref[...] += jnp.sum(x, axis=1)

    if mask_last:
        # Only the last reduction step needs the out-of-bounds-H mask.
        @pl.when(h < last)
        def _():
            accumulate(False)

        @pl.when(h == last)
        def _():
            accumulate(True)
    else:
        accumulate(False)

    @pl.when(h == last)
    def _():
        acc = acc_ref[...]  # (TBC, G*W) f32
        # Fold the G lane-groups into the first W lanes: log2(G) roll + add.
        # (Modular rotation over the full lane axis is direction-agnostic here
        # because the partial sums are periodic with the current fold span.)
        g = G
        while g > 1:
            g //= 2
            acc = acc + pltpu.roll(acc, shift=g * W, axis=1)
        if G > 1:
            o_ref[...] = acc[:, :W].astype(o_ref.dtype)
        else:
            o_ref[...] = acc.astype(o_ref.dtype)


def code_sum_block(x):
    """Equivalent of CodeSumBlock.forward: sum over dim=2 of a 4-D NCHW tensor."""
    B, C, H, W = x.shape
    BC = B * C
    if BC == 0 or W == 0 or H == 0:
        return jnp.zeros((B, C, W), dtype=x.dtype)

    itemsize = jnp.dtype(x.dtype).itemsize

    # Lane-dense repack (zero-copy reshape of contiguous dims) for narrow W.
    G = _pick_group(H, W)
    Hp, Wp = H // G, G * W
    x_flat = x.reshape(BC, Hp, Wp)

    vmem_cap = _vmem_capacity_bytes()
    # Smaller per-block budget on 64 MiB-VMEM parts (v7x); larger on 128 MiB parts.
    budget = 4 * 1024 * 1024 if vmem_cap <= 80 * 1024 * 1024 else 8 * 1024 * 1024
    vmem_limit = int(
        min(64 * 1024 * 1024, max(32 * 1024 * 1024, vmem_cap - 16 * 1024 * 1024))
    )

    TBC, TH, TW = _pick_tiles(BC, Hp, Wp, itemsize, budget, force_full_w=(G > 1))

    grid = (_cdiv(BC, TBC), _cdiv(Wp, TW), _cdiv(Hp, TH))
    mask_last = (Hp % TH) != 0
    out_lane = W if G > 1 else TW

    kernel = functools.partial(
        _sum_h_kernel, Hp=Hp, TH=TH, G=G, W=W, mask_last=mask_last
    )

    out_flat = pl.pallas_call(
        kernel,
        out_shape=jax.ShapeDtypeStruct((BC, W), x.dtype),
        grid=grid,
        in_specs=[pl.BlockSpec((TBC, TH, TW), lambda i, j, h: (i, h, j))],
        out_specs=pl.BlockSpec((TBC, out_lane), lambda i, j, h: (i, j)),
        scratch_shapes=[pltpu.VMEM((TBC, TW), jnp.float32)],
        compiler_params=pltpu.CompilerParams(
            dimension_semantics=("parallel", "parallel", "arbitrary"),
            vmem_limit_bytes=vmem_limit,
        ),
    )(x_flat)

    return out_flat.reshape(B, C, W)


if __name__ == "__main__":
    key = jax.random.PRNGKey(0)
    B, C, H, W = 2, 4, 16, 16
    x = jax.random.normal(key, (B, C, H, W), dtype=jnp.float32)

    out = code_sum_block(x)
    out = jax.block_until_ready(out)

    ref = jnp.sum(x, axis=2)
    assert out.shape == (B, C, W), out.shape
    assert jnp.allclose(out, ref, atol=1e-5, rtol=1e-5)

    print("KERNEL_OK")
</pallas_src>

<mosaic_0001>
module attributes {stable_mosaic.version = 11 : i64} {
  func.func @_sum_h_kernel(%arg0: i32, %arg1: i32, %arg2: i32, %arg3: memref<8x2x128xf32, #tpu.memory_space<vmem>>, %arg4: memref<8x16xf32, #tpu.memory_space<vmem>>, %arg5: memref<8x128xf32, #tpu.memory_space<vmem>>) attributes {dimension_semantics = [#tpu.dimension_semantics<parallel>, #tpu.dimension_semantics<parallel>, #tpu.dimension_semantics<arbitrary>], iteration_bounds = array<i64: 1, 1, 1>, scalar_prefetch = 0 : i64, scratch_operands = 1 : i64, tpu.core_type = #tpu.core_type<tc>, window_params = [{transform_indices = @transform_0, window_bounds = array<i64: 8, 2, 128>}, {transform_indices = @transform_1, window_bounds = array<i64: 8, 16>}]} {
    %c0_i32 = arith.constant 0 : i32
    %0 = arith.cmpi eq, %arg2, %c0_i32 : i32
    %1 = arith.extui %0 : i1 to i32
    %c0_i32_0 = arith.constant 0 : i32
    %2 = arith.cmpi ne, %1, %c0_i32_0 : i32
    scf.if %2 {
      %cst_9 = arith.constant 0.000000e+00 : f32
      %11 = vector.broadcast %cst_9 : f32 to vector<8x128xf32>
      %c0_10 = arith.constant 0 : index
      %c0_11 = arith.constant 0 : index
      %12 = vector.load %arg5[%c0_10, %c0_11] : memref<8x128xf32, #tpu.memory_space<vmem>>, vector<8x128xf32>
      tpu.vector_store %arg5[%c0_10, %c0_11], %11 {strides = array<i32>} : memref<8x128xf32, #tpu.memory_space<vmem>>, vector<8x128xf32>,
    } else {
    }
    %c0 = arith.constant 0 : index
    %c0_1 = arith.constant 0 : index
    %c0_2 = arith.constant 0 : index
    %3 = vector.load %arg3[%c0, %c0_1, %c0_2] : memref<8x2x128xf32, #tpu.memory_space<vmem>>, vector<8x2x128xf32>
    %c0_3 = arith.constant 0 : index
    %c0_4 = arith.constant 0 : index
    %4 = vector.load %arg5[%c0_3, %c0_4] : memref<8x128xf32, #tpu.memory_space<vmem>>, vector<8x128xf32>
    %cst = arith.constant dense<0.000000e+00> : vector<8x128xf32>
    %5 = vector.multi_reduction <add>, %3, %cst [1] : vector<8x2x128xf32> to vector<8x128xf32>
    %6 = arith.addf %4, %5 : vector<8x128xf32>
    %c0_5 = arith.constant 0 : index
    %c0_6 = arith.constant 0 : index
    %7 = vector.load %arg5[%c0_5, %c0_6] : memref<8x128xf32, #tpu.memory_space<vmem>>, vector<8x128xf32>
    tpu.vector_store %arg5[%c0_5, %c0_6], %6 {strides = array<i32>} : memref<8x128xf32, #tpu.memory_space<vmem>>, vector<8x128xf32>,
    %c0_i32_7 = arith.constant 0 : i32
    %8 = arith.cmpi eq, %arg2, %c0_i32_7 : i32
    %9 = arith.extui %8 : i1 to i32
    %c0_i32_8 = arith.constant 0 : i32
    %10 = arith.cmpi ne, %9, %c0_i32_8 : i32
    scf.if %10 {
      %c0_9 = arith.constant 0 : index
      %c0_10 = arith.constant 0 : index
      %11 = vector.load %arg5[%c0_9, %c0_10] : memref<8x128xf32, #tpu.memory_space<vmem>>, vector<8x128xf32>
      %c64_i32 = arith.constant 64 : i32
      %12 = tpu.dynamic_rotate %11 by %c64_i32 dim 1 : vector<8x128xf32>, i32 -> vector<8x128xf32>
      %13 = arith.addf %11, %12 : vector<8x128xf32>
      %c32_i32 = arith.constant 32 : i32
      %14 = tpu.dynamic_rotate %13 by %c32_i32 dim 1 : vector<8x128xf32>, i32 -> vector<8x128xf32>
      %15 = arith.addf %13, %14 : vector<8x128xf32>
      %c16_i32 = arith.constant 16 : i32
      %16 = tpu.dynamic_rotate %15 by %c16_i32 dim 1 : vector<8x128xf32>, i32 -> vector<8x128xf32>
      %17 = arith.addf %15, %16 : vector<8x128xf32>
      %18 = vector.extract_strided_slice %17 {offsets = [0, 0], sizes = [8, 16], strides = [1, 1]} : vector<8x128xf32> to vector<8x16xf32>
      %c0_11 = arith.constant 0 : index
      %c0_12 = arith.constant 0 : index
      %19 = vector.load %arg4[%c0_11, %c0_12] : memref<8x16xf32, #tpu.memory_space<vmem>>, vector<8x16xf32>
      tpu.vector_store %arg4[%c0_11, %c0_12], %18 {strides = array<i32>} : memref<8x16xf32, #tpu.memory_space<vmem>>, vector<8x16xf32>,
    } else {
    }
    return
  }
  func.func @transform_0(%arg0: i32, %arg1: i32, %arg2: i32) -> (i32, i32, i32) {
    %c0_i32 = arith.constant 0 : i32
    return %arg0, %arg2, %arg1 : i32, i32, i32
  }
  func.func @transform_1(%arg0: i32, %arg1: i32, %arg2: i32) -> (i32, i32) {
    %c0_i32 = arith.constant 0 : i32
    return %arg0, %arg1 : i32, i32
  }
}

</mosaic_0001>

<llo_original>
// kernel: tpu_custom_call.1
$region0: #{tpu_custom_call.1}
  #allocation0 [shape = 'u32[]', space=smem, size = 0x4, offset = 0x4, fixed_abs, tag = 'smem constant byte address 0x4 - core index']
  #allocation1 [shape = 'u32[72,128]{1,0:T(1,128)}', space=vmem, size = 0x9000, scoped, tag = 'internal scratch']
  #allocation2 [shape = 'f32[8,128]{1,0:T(8,128)}', space=vmem, size = 0x1000, scoped, tag = 'scratch operand']
  %s0 = inlined_call_operand.hbm [shape: f32[8,2,128], index: 0, kind: input, shape index: {}]
  %s1 = inlined_call_operand.hbm [shape: f32[8,16], index: 1, kind: output, shape index: {}]
  %s2 = sld [smem:[#allocation0]]
  $region26: #{tpu_custom_call.1} parent=0
    _
  %s4 = ssub.s32 1, %s2
  %s5 = scalar_select 0, %s4, %s2
  $region1: #{tpu_custom_call.1} parent=0
    #allocation3 [shape = 'u8[8192]{0}', space=vmem, size = 0x2000, scoped, tag = 'input window, operand 0, single buffered']
    #allocation4 [shape = 's32[1]{0}', space=sflag, size = 0x4, scoped, tag = 'scoped memory for tpu_custom_call.1']
    #allocation5 [shape = 's32[1]{0}', space=sflag, size = 0x4, scoped, tag = 'scoped memory for tpu_custom_call.1']
    #allocation6 [shape = 'u8[4096]{0}', space=vmem, size = 0x1000, scoped, tag = 'output window, operand 0, single buffered']
    %6 = vsyncpa [#allocation4], 0
    %7 = vsyncpa [#allocation5], 0
    // Predicated region
    $region2: #{tpu_custom_call.1} parent=1 // pred_check
      _
    $region3: #{tpu_custom_call.1} parent=1 // pred_check_branch
      %9 = sbr.rel (0) target = $region5
    $region4: #{tpu_custom_call.1} parent=1 // pred_region
      %11 = vsyncadd [#allocation4], 0
      %s12 = sshll.u32 %s0, 4
      %s13 = int_to_ptr.hbm [resolvable:$true] %s12
      %s14 = sshll.u32 [#allocation3], 4
      %s15 = int_to_ptr.vmem [resolvable:$true] %s14
      %20 = dma.hbm_to_vmem [thread:$0]  %s13, 256, %s15, [#allocation4], 32, 32, 2
    $region5: #{tpu_custom_call.1} parent=1 // pred_fallthru
      _
    // Predicated region
    $region6: #{tpu_custom_call.1} parent=1 // pred_check
      _
    $region7: #{tpu_custom_call.1} parent=1 // pred_check_branch
      %22 = sbr.rel (0) target = $region9
    $region8: #{tpu_custom_call.1} parent=1 // pred_region
      %24 = dma.done [#allocation4], 256
    $region9: #{tpu_custom_call.1} parent=1 // pred_fallthru
      _
    %p25 = scmp.eq.s32.totalorder 0, 0
    // Predicated region
    $region10: #{tpu_custom_call.1} parent=1 // pred_check
      %p26 = pneg %p25
    $region11: #{tpu_custom_call.1} parent=1 // pred_check_branch
      %28 = sbr.rel (%p26) target = $region13
    $region12: #{tpu_custom_call.1} parent=1 // pred_region
      %29 = vst [vmem:[#allocation2] sm:$0xff] 0.0
    $region13: #{tpu_custom_call.1} parent=1 // pred_fallthru
      _
    %v30 = vld [vmem:[#allocation3] sm:$0x3]
    %v31 = vld [vmem:[#allocation3 + $0x2] sm:$0x3]
    %v32 = vld [vmem:[#allocation3 + $0x4] sm:$0x3]
    %v33 = vld [vmem:[#allocation3 + $0x6] sm:$0x3]
    %v34 = vld [vmem:[#allocation3 + $0x8] sm:$0x3]
    %v35 = vld [vmem:[#allocation3 + $0xa] sm:$0x3]
    %v36 = vld [vmem:[#allocation3 + $0xc] sm:$0x3]
    %v37 = vld [vmem:[#allocation3 + $0xe] sm:$0x3]
    %v38 = vld [vmem:[#allocation2] sm:$0xff]
    %vm39 = vcmask 1041408
    %v40 = vsel %vm39, %v30, 0.0
    %v41 = vrot.slane %v40, 4
    %v42 = vadd.f32 %v40, %v41
    %v43 = vrot.slane %v42, 2
    %v44 = vadd.f32 %v42, %v43
    %v45 = vrot.slane %v44, 1
    %v46 = vadd.f32 %v44, %v45
    %v47 = vsel %vm39, %v31, 0.0
    %v48 = vrot.slane %v47, 4
    %v49 = vadd.f32 %v47, %v48
    %v50 = vrot.slane %v49, 2
    %v51 = vadd.f32 %v49, %v50
    %v52 = vrot.slane %v51, 1
    %v53 = vadd.f32 %v51, %v52
    %v54 = vsel %vm39, %v32, 0.0
    %v55 = vrot.slane %v54, 4
    %v56 = vadd.f32 %v54, %v55
    %v57 = vrot.slane %v56, 2
    %v58 = vadd.f32 %v56, %v57
    %v59 = vrot.slane %v58, 1
    %v60 = vadd.f32 %v58, %v59
    %v61 = vsel %vm39, %v33, 0.0
    %v62 = vrot.slane %v61, 4
    %v63 = vadd.f32 %v61, %v62
    %v64 = vrot.slane %v63, 2
    %v65 = vadd.f32 %v63, %v64
    %v66 = vrot.slane %v65, 1
    %v67 = vadd.f32 %v65, %v66
    %v68 = vsel %vm39, %v34, 0.0
    %v69 = vrot.slane %v68, 4
    %v70 = vadd.f32 %v68, %v69
    %v71 = vrot.slane %v70, 2
    %v72 = vadd.f32 %v70, %v71
    %v73 = vrot.slane %v72, 1
    %v74 = vadd.f32 %v72, %v73
    %v75 = vsel %vm39, %v35, 0.0
    %v76 = vrot.slane %v75, 4
    %v77 = vadd.f32 %v75, %v76
    %v78 = vrot.slane %v77, 2
    %v79 = vadd.f32 %v77, %v78
    %v80 = vrot.slane %v79, 1
    %v81 = vadd.f32 %v79, %v80
    %v82 = vsel %vm39, %v36, 0.0
    %v83 = vrot.slane %v82, 4
    %v84 = vadd.f32 %v82, %v83
    %v85 = vrot.slane %v84, 2
    %v86 = vadd.f32 %v84, %v85
    %v87 = vrot.slane %v86, 1
    %v88 = vadd.f32 %v86, %v87
    %v89 = vsel %vm39, %v37, 0.0
    %v90 = vrot.slane %v89, 4
    %v91 = vadd.f32 %v89, %v90
    %v92 = vrot.slane %v91, 2
    %v93 = vadd.f32 %v91, %v92
    %v94 = vrot.slane %v93, 1
    %v95 = vadd.f32 %v93, %v94
    %vm104 = vcmask 1041409
    %v105 = vsel %vm104, %v53, %v46
    %vm106 = vcmask 1042434
    %v107 = vsel %vm106, %v60, %v105
    %vm108 = vcmask 1043459
    %v109 = vsel %vm108, %v67, %v107
    %vm110 = vcmask 1044484
    %v111 = vsel %vm110, %v74, %v109
    %vm112 = vcmask 1045509
    %v113 = vsel %vm112, %v81, %v111
    %vm114 = vcmask 1046534
    %v115 = vsel %vm114, %v88, %v113
    %vm116 = vcmask 1047559
    %v117 = vsel %vm116, %v95, %v115
    %v119 = vadd.f32 %v38, %v117
    %120 = vst [vmem:[#allocation2] sm:$0xff] %v119
    // Predicated region
    $region14: #{tpu_custom_call.1} parent=1 // pred_check
      %p121 = pneg %p25
    $region15: #{tpu_custom_call.1} parent=1 // pred_check_branch
      %123 = sbr.rel (%p121) target = $region17
    $region16: #{tpu_custom_call.1} parent=1 // pred_region
      %v124 = vld [vmem:[#allocation2] sm:$0xff]
      %125 = vrot.lane.b32.xlu0 %v124, 64
      %v126 = vpop.permute.xlu0 %125
      %v127 = vadd.f32 %v124, %v126
      %128 = vrot.lane.b32.xlu0 %v127, 32
      %v129 = vpop.permute.xlu0 %128
      %v130 = vadd.f32 %v127, %v129
      %131 = vrot.lane.b32.xlu0 %v130, 16
      %v132 = vpop.permute.xlu0 %131
      %v133 = vadd.f32 %v130, %v132
      %vm134 = vcmask 130048
      %135 = vst.msk [vmem:[#allocation6] sm:$0xff] %vm134, %v133
    $region17: #{tpu_custom_call.1} parent=1 // pred_fallthru
      _
    // Predicated region
    $region18: #{tpu_custom_call.1} parent=1 // pred_check
      _
    $region19: #{tpu_custom_call.1} parent=1 // pred_check_branch
      %137 = sbr.rel (0) target = $region21
    $region20: #{tpu_custom_call.1} parent=1 // pred_region
      %139 = vsyncadd [#allocation5], 0
      %s141 = sshll.u32 [#allocation6], 4
      %s142 = int_to_ptr.vmem [resolvable:$true] %s141
      %s143 = sshll.u32 %s1, 4
      %s144 = int_to_ptr.hbm [resolvable:$true] %s143
      %146 = dma.vmem_to_hbm [thread:$0]  %s142, 128, %s144, [#allocation5]
    $region21: #{tpu_custom_call.1} parent=1 // pred_fallthru
      _
    // Predicated region
    $region22: #{tpu_custom_call.1} parent=1 // pred_check
      _
    $region23: #{tpu_custom_call.1} parent=1 // pred_check_branch
      %148 = sbr.rel (0) target = $region25
    $region24: #{tpu_custom_call.1} parent=1 // pred_region
      %150 = dma.done [#allocation5], 128
    $region25: #{tpu_custom_call.1} parent=1 // pred_fallthru
      _
    %151 = vsyncpa [#allocation4], 1
    %152 = vsyncpa [#allocation5], 1

</llo_original>
